<compile_context>
chip_gen: v6e
topology: v6e:2x2x1
jax: 0.10.0
libtpu: 0.0.40
codegen_flags: <defaults>
</compile_context>

<pallas_src>
import functools

import jax
import jax.numpy as jnp
import numpy as np
from jax.experimental import pallas as pl
from jax.experimental.pallas import tpu as pltpu

MIN_VALUE = 475.75
MAX_VALUE = 489.0

# Threshold(0, 0) elision is only valid because the clamp floor is positive.
assert MIN_VALUE > 0.0, "Threshold(0,0) elision requires MIN_VALUE > 0"


def convt_clamp_kernel(w_ref, x_ref, b_ref, o_ref):
    # (24, 8) @ (8, 384) on the MXU, f32 accumulate.
    y = jnp.dot(w_ref[...], x_ref[...], preferred_element_type=jnp.float32)
    y = y + b_ref[...]              # (24,1) broadcast over lanes; VALU, hidden
    y = jnp.maximum(y, MIN_VALUE)   # torch.clamp_min
    y = jnp.minimum(y, MAX_VALUE)   # torch.clamp_max
    # torch.nn.Threshold(0.0, 0.0) is a no-op: every element >= 475.75 > 0.
    o_ref[...] = y


def prepare_params(weight, bias):
    """One-time parameter prep (hoisted out of the per-call path).

    weight: (C_in, C_out, KH, KW) PyTorch ConvTranspose2d layout
    bias:   (C_out,)
    Returns w_mat (KH*KW*C_out, C_in) with rows ordered (kh, kw, co), and
    b_col (KH*KW*C_out, 1) tiled to match that row ordering.
    """
    C_in, C_out, KH, KW = weight.shape
    M = KH * KW * C_out
    w_mat = jnp.asarray(weight, jnp.float32).transpose(2, 3, 1, 0).reshape(M, C_in)
    b_col = jnp.tile(jnp.asarray(bias, jnp.float32), KH * KW).reshape(M, 1)
    return w_mat, b_col


@functools.partial(jax.jit, static_argnames=("stride", "padding", "kh", "kw"))
def model_forward(x_nchw, w_mat, b_col, *, stride=2, padding=1, kh=2, kw=2):
    """x_nchw: (1, C_in, H, W) f32; w_mat: (KH*KW*C_out, C_in); b_col: (M, 1)."""
    N, C_in, H, W = x_nchw.shape
    M = w_mat.shape[0]
    C_out = M // (kh * kw)

    # The conv-to-matmul collapse relies on non-overlapping taps.
    assert N == 1
    assert stride == kh == kw == 2 and padding == 1, "kernel assumes stride==K==2, pad==1"

    H_out = (H - 1) * stride - 2 * padding + kh     # 36
    W_out = (W - 1) * stride - 2 * padding + kw     # 32
    HW = H * W                                      # 323
    HW_pad = ((HW + 127) // 128) * 128              # 384 = 3 * 128 lanes

    # ---- glue (fused under jit): NCHW is channel-major -> plain reshape, zero-pad lanes.
    x_flat = x_nchw[0].reshape(C_in, HW).astype(jnp.float32)
    x_pad = jnp.pad(x_flat, ((0, 0), (0, HW_pad - HW)))                      # (8, 384)

    flops = 2 * M * C_in * HW_pad
    bytes_accessed = 4 * (M * C_in + C_in * HW_pad + M + M * HW_pad)

    y = pl.pallas_call(
        convt_clamp_kernel,
        out_shape=jax.ShapeDtypeStruct((M, HW_pad), jnp.float32),
        in_specs=[
            pl.BlockSpec(memory_space=pltpu.MemorySpace.VMEM),   # w_mat (24, 8)
            pl.BlockSpec(memory_space=pltpu.MemorySpace.VMEM),   # x_pad (8, 384)
            pl.BlockSpec(memory_space=pltpu.MemorySpace.VMEM),   # b_col (24, 1)
        ],
        out_specs=pl.BlockSpec(memory_space=pltpu.MemorySpace.VMEM),
        cost_estimate=pl.CostEstimate(
            flops=flops, transcendentals=0, bytes_accessed=bytes_accessed),
    )(w_mat, x_pad, b_col)

    # ---- glue (fused under jit): crop pad lanes, interleave taps, crop conv padding.
    # y rows are (kh, kw, co); columns are (ih, iw).
    y5 = y[:, :HW].reshape(kh, kw, C_out, H, W)
    full = y5.transpose(2, 3, 0, 4, 1).reshape(C_out, H * kh, W * kw)  # [co, 2*ih+kh, 2*iw+kw]
    out = full[:, padding:padding + H_out, padding:padding + W_out]    # (6, 36, 32)
    return out[None]                                                   # (1, 6, 36, 32) NCHW


def _numpy_reference(x, weight, bias):
    xn = np.asarray(x)[0]           # (C_in, H, W)
    wn = np.asarray(weight)         # (C_in, C_out, KH, KW)
    bn = np.asarray(bias)
    C_in, H, W = xn.shape
    C_out, KH, KW = wn.shape[1], wn.shape[2], wn.shape[3]
    full = np.zeros((C_out, H * 2, W * 2), dtype=np.float32)
    for kh in range(KH):
        for kw in range(KW):
            full[:, kh::2, kw::2] += np.einsum("chw,cd->dhw", xn, wn[:, :, kh, kw])
    ref = full[:, 1:1 + 36, 1:1 + 32] + bn[:, None, None]
    ref = np.maximum(ref, MIN_VALUE)
    ref = np.minimum(ref, MAX_VALUE)
    ref = np.where(ref > 0.0, ref, 0.0)   # reference keeps the Threshold for validation
    return ref[None]


if __name__ == "__main__":
    key = jax.random.PRNGKey(0)
    k1, k2, k3 = jax.random.split(key, 3)

    # input matching the PyTorch module's expected shape
    x = jax.random.normal(k1, (1, 8, 19, 17), dtype=jnp.float32)

    # deterministic synthetic parameters (PyTorch ConvTranspose2d shapes)
    weight = jax.random.normal(k2, (8, 6, 2, 2), dtype=jnp.float32) * 0.1   # (C_in, C_out, KH, KW)
    bias = jax.random.normal(k3, (6,), dtype=jnp.float32) * 0.1

    # one-time parameter prep (hoisted out of the per-call path)
    w_mat, b_col = prepare_params(weight, bias)

    out = model_forward(x, w_mat, b_col)
    out = jax.block_until_ready(out)

    ref = _numpy_reference(x, weight, bias)
    np.testing.assert_allclose(np.asarray(out), ref, rtol=1e-5, atol=1e-4)

    assert out.shape == (1, 6, 36, 32)
    print("KERNEL_OK")
</pallas_src>

<mosaic_0001>
module attributes {stable_mosaic.version = 11 : i64} {
  func.func @convt_clamp_kernel(%arg0: memref<24x8xf32, #tpu.memory_space<vmem>>, %arg1: memref<8x384xf32, #tpu.memory_space<vmem>>, %arg2: memref<24x1xf32, #tpu.memory_space<vmem>>, %arg3: memref<24x384xf32, #tpu.memory_space<vmem>>) attributes {dimension_semantics = [], scalar_prefetch = 0 : i64, scratch_operands = 0 : i64, tpu.core_type = #tpu.core_type<tc>} {
    %c0 = arith.constant 0 : index
    %c0_0 = arith.constant 0 : index
    %0 = vector.load %arg0[%c0, %c0_0] : memref<24x8xf32, #tpu.memory_space<vmem>>, vector<24x8xf32>
    %c0_1 = arith.constant 0 : index
    %c0_2 = arith.constant 0 : index
    %1 = vector.load %arg1[%c0_1, %c0_2] : memref<8x384xf32, #tpu.memory_space<vmem>>, vector<8x384xf32>
    %cst = arith.constant dense<0.000000e+00> : vector<24x384xf32>
    %2 = tpu.matmul %0, %1, %cst {dimension_numbers = #tpu.dot_dimension_numbers<[1], [0], [0], [1], [0, 0, 1, 1], [], []>} : vector<24x8xf32>, vector<8x384xf32>, vector<24x384xf32> -> vector<24x384xf32>
    %c0_3 = arith.constant 0 : index
    %c0_4 = arith.constant 0 : index
    %3 = vector.load %arg2[%c0_3, %c0_4] : memref<24x1xf32, #tpu.memory_space<vmem>>, vector<24x1xf32>
    %4 = vector.broadcast %3 : vector<24x1xf32> to vector<24x384xf32>
    %5 = arith.addf %2, %4 : vector<24x384xf32>
    %cst_5 = arith.constant 4.757500e+02 : f32
    %6 = vector.broadcast %cst_5 : f32 to vector<24x384xf32>
    %7 = arith.maximumf %5, %6 : vector<24x384xf32>
    %cst_6 = arith.constant 4.890000e+02 : f32
    %8 = vector.broadcast %cst_6 : f32 to vector<24x384xf32>
    %9 = arith.minimumf %7, %8 : vector<24x384xf32>
    %c0_7 = arith.constant 0 : index
    %c0_8 = arith.constant 0 : index
    %10 = vector.load %arg3[%c0_7, %c0_8] : memref<24x384xf32, #tpu.memory_space<vmem>>, vector<24x384xf32>
    tpu.vector_store %arg3[%c0_7, %c0_8], %9 {strides = array<i32>} : memref<24x384xf32, #tpu.memory_space<vmem>>, vector<24x384xf32>,
    return
  }
}

</mosaic_0001>

<llo_original>
// kernel: squeeze.1
$region0: #{squeeze.1}
  %s0 = inlined_call_operand.vmem [shape: f32[1,8,19,17], index: 0, kind: input, shape index: {}]
  %s1 = inlined_call_operand.vmem [shape: f32[8,323], index: 1, kind: output, shape index: {}]
  %v2 = vld [vmem:[%s0] ss:$24 sm:$0xf]
  %v3 = vld [vmem:[%s0] ss:$24 sm:$0xf0]
  %vm4 = vcmask 1047556
  %v5 = vsel %vm4, %v3, %v2
  %vm6 = vcmask 138240
  %7 = vst.msk [vmem:[%s1] sm:$0xff] %vm6, %v5
  %s8 = scalar_lea.vmem %s0, 15
  %v9 = vld [vmem:[%s8] ss:$24 sm:$0xf]
  %s10 = scalar_lea.vmem %s0, 15
  %v11 = vld [vmem:[%s10] ss:$24 sm:$0xf0]
  %vm12 = vcmask 1047556
  %v13 = vsel %vm12, %v11, %v9
  %s14 = scalar_lea.vmem %s0, 15
  %v15 = vld [vmem:[%s14] ss:$24 sm:$0xf]
  %s16 = scalar_lea.vmem %s0, 15
  %v17 = vld [vmem:[%s16] ss:$24 sm:$0xf0]
  %vm18 = vcmask 1047556
  %v19 = vsel %vm18, %v17, %v15
  %vm20 = vcmask 7168
  %v21 = vsel %vm20, %v19, %v13
  %22 = vrot.lane.b32.xlu0 %v21, 127
  %v23 = vpop.permute.xlu0 %22
  %vm24 = vcmask 130048
  %s25 = scalar_lea.vmem %s1, 16
  %26 = vst.msk [vmem:[%s25] sm:$0xff] %vm24, %v23
  %vm27 = vcmask 1048568
  %s28 = scalar_lea.vmem %s1, 8
  %29 = vst.msk [vmem:[%s28] sm:$0xff] %vm27, %v23
  %s30 = scalar_lea.vmem %s0, 7
  %v31 = vld [vmem:[%s30] ss:$24 sm:$0xf]
  %s32 = scalar_lea.vmem %s0, 7
  %v33 = vld [vmem:[%s32] ss:$24 sm:$0xf0]
  %vm34 = vcmask 1047556
  %v35 = vsel %vm34, %v33, %v31
  %s36 = scalar_lea.vmem %s0, 7
  %v37 = vld [vmem:[%s36] ss:$24 sm:$0xf]
  %s38 = scalar_lea.vmem %s0, 7
  %v39 = vld [vmem:[%s38] ss:$24 sm:$0xf0]
  %vm40 = vcmask 1047556
  %v41 = vsel %vm40, %v39, %v37
  %vm42 = vcmask 72704
  %v43 = vsel %vm42, %v41, %v35
  %44 = vrot.lane.b32.xlu0 %v43, 119
  %v45 = vpop.permute.xlu0 %44
  %vm46 = vcmask 64512
  %s47 = scalar_lea.vmem %s1, 8
  %48 = vst.msk [vmem:[%s47] sm:$0xff] %vm46, %v45
  %vm49 = vcmask 1048504
  %50 = vst.msk [vmem:[%s1] sm:$0xff] %vm49, %v45
  %s51 = scalar_lea.vmem %s0, 14
  %v52 = vld [vmem:[%s51] ss:$24 sm:$0xf]
  %s53 = scalar_lea.vmem %s0, 14
  %v54 = vld [vmem:[%s53] ss:$24 sm:$0xf0]
  %vm55 = vcmask 1047556
  %v56 = vsel %vm55, %v54, %v52
  %57 = vrot.lane.b32.xlu0 %v56, 110
  %v58 = vpop.permute.xlu0 %57
  %vm59 = vcmask 1040240
  %s60 = scalar_lea.vmem %s1, 8
  %61 = vst.msk [vmem:[%s60] sm:$0xff] %vm59, %v58
  %s62 = scalar_lea.vmem %s0, 6
  %v63 = vld [vmem:[%s62] ss:$24 sm:$0xf]
  %s64 = scalar_lea.vmem %s0, 6
  %v65 = vld [vmem:[%s64] ss:$24 sm:$0xf0]
  %vm66 = vcmask 1047556
  %v67 = vsel %vm66, %v65, %v63
  %68 = vrot.lane.b32.xlu0 %v67, 102
  %v69 = vpop.permute.xlu0 %68
  %vm70 = vcmask 974640
  %71 = vst.msk [vmem:[%s1] sm:$0xff] %vm70, %v69
  %s72 = scalar_lea.vmem %s0, 13
  %v73 = vld [vmem:[%s72] ss:$24 sm:$0xf]
  %s74 = scalar_lea.vmem %s0, 13
  %v75 = vld [vmem:[%s74] ss:$24 sm:$0xf0]
  %vm76 = vcmask 1047556
  %v77 = vsel %vm76, %v75, %v73
  %78 = vrot.lane.b32.xlu0 %v77, 93
  %v79 = vpop.permute.xlu0 %78
  %vm80 = vcmask 900840
  %s81 = scalar_lea.vmem %s1, 8
  %82 = vst.msk [vmem:[%s81] sm:$0xff] %vm80, %v79
  %s83 = scalar_lea.vmem %s0, 5
  %v84 = vld [vmem:[%s83] ss:$24 sm:$0xf]
  %s85 = scalar_lea.vmem %s0, 5
  %v86 = vld [vmem:[%s85] ss:$24 sm:$0xf0]
  %vm87 = vcmask 1047556
  %v88 = vsel %vm87, %v86, %v84
  %89 = vrot.lane.b32.xlu0 %v88, 85
  %v90 = vpop.permute.xlu0 %89
  %vm91 = vcmask 835240
  %92 = vst.msk [vmem:[%s1] sm:$0xff] %vm91, %v90
  %s93 = scalar_lea.vmem %s0, 12
  %v94 = vld [vmem:[%s93] ss:$24 sm:$0xf]
  %s95 = scalar_lea.vmem %s0, 12
  %v96 = vld [vmem:[%s95] ss:$24 sm:$0xf0]
  %vm97 = vcmask 1047556
  %v98 = vsel %vm97, %v96, %v94
  %99 = vrot.lane.b32.xlu0 %v98, 76
  %v100 = vpop.permute.xlu0 %99
  %vm101 = vcmask 761440
  %s102 = scalar_lea.vmem %s1, 8
  %103 = vst.msk [vmem:[%s102] sm:$0xff] %vm101, %v100
  %s104 = scalar_lea.vmem %s0, 4
  %v105 = vld [vmem:[%s104] ss:$24 sm:$0xf]
  %s106 = scalar_lea.vmem %s0, 4
  %v107 = vld [vmem:[%s106] ss:$24 sm:$0xf0]
  %vm108 = vcmask 1047556
  %v109 = vsel %vm108, %v107, %v105
  %110 = vrot.lane.b32.xlu0 %v109, 68
  %v111 = vpop.permute.xlu0 %110
  %vm112 = vcmask 695840
  %113 = vst.msk [vmem:[%s1] sm:$0xff] %vm112, %v111
  %s114 = scalar_lea.vmem %s0, 11
  %v115 = vld [vmem:[%s114] ss:$24 sm:$0xf]
  %s116 = scalar_lea.vmem %s0, 11
  %v117 = vld [vmem:[%s116] ss:$24 sm:$0xf0]
  %vm118 = vcmask 1047556
  %v119 = vsel %vm118, %v117, %v115
  %120 = vrot.lane.b32.xlu0 %v119, 59
  %v121 = vpop.permute.xlu0 %120
  %vm122 = vcmask 622040
  %s123 = scalar_lea.vmem %s1, 8
  %124 = vst.msk [vmem:[%s123] sm:$0xff] %vm122, %v121
  %s125 = scalar_lea.vmem %s0, 3
  %v126 = vld [vmem:[%s125] ss:$24 sm:$0xf]
  %s127 = scalar_lea.vmem %s0, 3
  %v128 = vld [vmem:[%s127] ss:$24 sm:$0xf0]
  %vm129 = vcmask 1047556
  %v130 = vsel %vm129, %v128, %v126
  %131 = vrot.lane.b32.xlu0 %v130, 51
  %v132 = vpop.permute.xlu0 %131
  %vm133 = vcmask 556440
  %134 = vst.msk [vmem:[%s1] sm:$0xff] %vm133, %v132
  %s135 = scalar_lea.vmem %s0, 18
  %v136 = vld [vmem:[%s135] ss:$24 sm:$0xf]
  %s137 = scalar_lea.vmem %s0, 18
  %v138 = vld [vmem:[%s137] ss:$24 sm:$0xf0]
  %vm139 = vcmask 1047556
  %v140 = vsel %vm139, %v138, %v136
  %141 = vrot.lane.b32.xlu0 %v140, 50
  %v142 = vpop.permute.xlu0 %141
  %vm143 = vcmask 548240
  %s144 = scalar_lea.vmem %s1, 16
  %145 = vst.msk [vmem:[%s144] sm:$0xff] %vm143, %v142
  %s146 = scalar_lea.vmem %s0, 10
  %v147 = vld [vmem:[%s146] ss:$24 sm:$0xf]
  %s148 = scalar_lea.vmem %s0, 10
  %v149 = vld [vmem:[%s148] ss:$24 sm:$0xf0]
  %vm150 = vcmask 1047556
  %v151 = vsel %vm150, %v149, %v147
  %152 = vrot.lane.b32.xlu0 %v151, 42
  %v153 = vpop.permute.xlu0 %152
  %vm154 = vcmask 482640
  %s155 = scalar_lea.vmem %s1, 8
  %156 = vst.msk [vmem:[%s155] sm:$0xff] %vm154, %v153
  %s157 = scalar_lea.vmem %s0, 2
  %v158 = vld [vmem:[%s157] ss:$24 sm:$0xf]
  %s159 = scalar_lea.vmem %s0, 2
  %v160 = vld [vmem:[%s159] ss:$24 sm:$0xf0]
  %vm161 = vcmask 1047556
  %v162 = vsel %vm161, %v160, %v158
  %163 = vrot.lane.b32.xlu0 %v162, 34
  %v164 = vpop.permute.xlu0 %163
  %vm165 = vcmask 417040
  %166 = vst.msk [vmem:[%s1] sm:$0xff] %vm165, %v164
  %s167 = scalar_lea.vmem %s0, 17
  %v168 = vld [vmem:[%s167] ss:$24 sm:$0xf]
  %s169 = scalar_lea.vmem %s0, 17
  %v170 = vld [vmem:[%s169] ss:$24 sm:$0xf0]
  %vm171 = vcmask 1047556
  %v172 = vsel %vm171, %v170, %v168
  %173 = vrot.lane.b32.xlu0 %v172, 33
  %v174 = vpop.permute.xlu0 %173
  %vm175 = vcmask 408840
  %s176 = scalar_lea.vmem %s1, 16
  %177 = vst.msk [vmem:[%s176] sm:$0xff] %vm175, %v174
  %s178 = scalar_lea.vmem %s0, 9
  %v179 = vld [vmem:[%s178] ss:$24 sm:$0xf]
  %s180 = scalar_lea.vmem %s0, 9
  %v181 = vld [vmem:[%s180] ss:$24 sm:$0xf0]
  %vm182 = vcmask 1047556
  %v183 = vsel %vm182, %v181, %v179
  %184 = vrot.lane.b32.xlu0 %v183, 25
  %v185 = vpop.permute.xlu0 %184
  %vm186 = vcmask 343240
  %s187 = scalar_lea.vmem %s1, 8
  %188 = vst.msk [vmem:[%s187] sm:$0xff] %vm186, %v185
  %s189 = scalar_lea.vmem %s0, 1
  %v190 = vld [vmem:[%s189] ss:$24 sm:$0xf]
  %s191 = scalar_lea.vmem %s0, 1
  %v192 = vld [vmem:[%s191] ss:$24 sm:$0xf0]
  %vm193 = vcmask 1047556
  %v194 = vsel %vm193, %v192, %v190
  %195 = vrot.lane.b32.xlu0 %v194, 17
  %v196 = vpop.permute.xlu0 %195
  %vm197 = vcmask 277640
  %198 = vst.msk [vmem:[%s1] sm:$0xff] %vm197, %v196
  %s199 = scalar_lea.vmem %s0, 16
  %v200 = vld [vmem:[%s199] ss:$24 sm:$0xf]
  %s201 = scalar_lea.vmem %s0, 16
  %v202 = vld [vmem:[%s201] ss:$24 sm:$0xf0]
  %vm203 = vcmask 1047556
  %v204 = vsel %vm203, %v202, %v200
  %205 = vrot.lane.b32.xlu0 %v204, 16
  %v206 = vpop.permute.xlu0 %205
  %vm207 = vcmask 269440
  %s208 = scalar_lea.vmem %s1, 16
  %209 = vst.msk [vmem:[%s208] sm:$0xff] %vm207, %v206
  %s210 = scalar_lea.vmem %s0, 8
  %v211 = vld [vmem:[%s210] ss:$24 sm:$0xf]
  %s212 = scalar_lea.vmem %s0, 8
  %v213 = vld [vmem:[%s212] ss:$24 sm:$0xf0]
  %vm214 = vcmask 1047556
  %v215 = vsel %vm214, %v213, %v211
  %216 = vrot.lane.b32.xlu0 %v215, 8
  %v217 = vpop.permute.xlu0 %216
  %vm218 = vcmask 203840
  %s219 = scalar_lea.vmem %s1, 8
  %220 = vst.msk [vmem:[%s219] sm:$0xff] %vm218, %v217

// kernel: model_forward.1
$region0: #{model_forward.1}
  #allocation0 [shape = 'u32[]', space=smem, size = 0x4, offset = 0x4, fixed_abs, tag = 'smem constant byte address 0x4 - core index']
  #allocation1 [shape = 'u32[144,128]{1,0:T(1,128)}', space=vmem, size = 0x12000, scoped, tag = 'internal scratch']
  %s0 = inlined_call_operand.vmem [shape: f32[24,8], index: 0, kind: input, shape index: {}]
  %s1 = inlined_call_operand.vmem [shape: f32[8,384], index: 1, kind: input, shape index: {}]
  %s2 = inlined_call_operand.vmem [shape: f32[24,1], index: 2, kind: input, shape index: {}]
  %s3 = inlined_call_operand.vmem [shape: f32[24,384], index: 3, kind: output, shape index: {}]
  %s4 = sld [smem:[#allocation0]]
  $region22: #{model_forward.1} parent=0
    _
  %s6 = ssub.s32 1, %s4
  %s7 = scalar_select 0, %s6, %s4
  // Predicated region
  $region2: #{model_forward.1} parent=0 // pred_check
    _
  $region3: #{model_forward.1} parent=0 // pred_check_branch
    %9 = sbr.rel (0) target = $region5
  $region4: #{model_forward.1} parent=0 // pred_region
    _
  $region5: #{model_forward.1} parent=0 // pred_fallthru
    _
  // Predicated region
  $region6: #{model_forward.1} parent=0 // pred_check
    _
  $region7: #{model_forward.1} parent=0 // pred_check_branch
    %11 = sbr.rel (0) target = $region9
  $region8: #{model_forward.1} parent=0 // pred_region
    _
  $region9: #{model_forward.1} parent=0 // pred_fallthru
    _
  // Predicated region
  $region10: #{model_forward.1} parent=0 // pred_check
    _
  $region11: #{model_forward.1} parent=0 // pred_check_branch
    %13 = sbr.rel (0) target = $region13
  $region12: #{model_forward.1} parent=0 // pred_region
    _
  $region13: #{model_forward.1} parent=0 // pred_fallthru
    _
  %v14 = vld [vmem:[%s0] sm:$0xff]
  %v15 = vld [vmem:[%s0 + $0x8] sm:$0xff]
  %v16 = vld [vmem:[%s0 + $0x10] sm:$0xff]
  %v17 = vld [vmem:[%s1] sm:$0xff]
  %v18 = vld [vmem:[%s1 + $0x8] sm:$0xff]
  %v19 = vld [vmem:[%s1 + $0x10] sm:$0xff]
  %v20 = vld [vmem:[%s2] sm:$0xff]
  %v21 = vld [vmem:[%s2 + $0x8] sm:$0xff]
  %v22 = vld [vmem:[%s2 + $0x10] sm:$0xff]
  %24 = vset.pattern.permute.xlu0 0
  %25 = vperm.xlu0 %24, %v20
  %v26 = vpop.permute.xlu0 %25
  %29 = vset.pattern.permute.xlu0 0
  %30 = vperm.xlu0 %29, %v21
  %v31 = vpop.permute.xlu0 %30
  %34 = vset.pattern.permute.xlu0 0
  %35 = vperm.xlu0 %34, %v22
  %v36 = vpop.permute.xlu0 %35
  %vm38 = vcmask 64512
  %v40 = vsel %vm38, %v14, 0
  %v43 = vsel %vm38, %v15, 0
  %v46 = vsel %vm38, %v16, 0
  %48 = vmatprep.subr.mxu0 0.0
  %49 = vmatpush1.msra.mxu0 0.0
  %50 = vmatprep.subr.mxu0 0.0
  %51 = vmatpush1.msra.mxu0 0.0
  %52 = vmatprep.subr.mxu0 0.0
  %53 = vmatpush1.msra.mxu0 0.0
  %54 = vmatprep.subr.mxu0 0.0
  %55 = vmatpush1.msra.mxu0 0.0
  %56 = vmatprep.subr.mxu0 0.0
  %57 = vmatpush1.msra.mxu0 0.0
  %58 = vmatprep.subr.mxu0 0.0
  %59 = vmatpush1.msra.mxu0 0.0
  %60 = vmatprep.subr.mxu0 0.0
  %61 = vmatpush1.msra.mxu0 0.0
  %62 = vmatprep.subr.mxu0 0.0
  %63 = vmatpush1.msra.mxu0 0.0
  %64 = vmatprep.subr.mxu0 0.0
  %65 = vmatpush1.msra.mxu0 0.0
  %66 = vmatprep.subr.mxu0 0.0
  %67 = vmatpush1.msra.mxu0 0.0
  %68 = vmatprep.subr.mxu0 0.0
  %69 = vmatpush1.msra.mxu0 0.0
  %70 = vmatprep.subr.mxu0 0.0
  %71 = vmatpush1.msra.mxu0 0.0
  %72 = vmatprep.subr.mxu0 0.0
  %73 = vmatpush1.msra.mxu0 0.0
  %74 = vmatprep.subr.mxu0 0.0
  %75 = vmatpush1.msra.mxu0 0.0
  %76 = vmatprep.subr.mxu0 0.0
  %77 = vmatpush1.msra.mxu0 0.0
  %78 = vmatprep.subr.mxu0 %v18
  %79 = vmatpush1.msra.mxu0 %v17
  %80 = vmatprep.subr.mxu0 0.0
  %81 = vmatpush2.msra.mxu0 0.0
  %82 = vmatprep.subr.mxu0 0.0
  %83 = vmatpush2.msra.mxu0 0.0
  %84 = vmatprep.subr.mxu0 0.0
  %85 = vmatpush2.msra.mxu0 0.0
  %86 = vmatprep.subr.mxu0 0.0
  %87 = vmatpush2.msra.mxu0 0.0
  %88 = vmatprep.subr.mxu0 0.0
  %89 = vmatpush2.msra.mxu0 0.0
  %90 = vmatprep.subr.mxu0 0.0
  %91 = vmatpush2.msra.mxu0 0.0
  %92 = vmatprep.subr.mxu0 0.0
  %93 = vmatpush2.msra.mxu0 0.0
  %94 = vmatprep.subr.mxu0 0.0
  %95 = vmatpush2.msra.mxu0 0.0
  %96 = vmatprep.subr.mxu0 0.0
  %97 = vmatpush2.msra.mxu0 0.0
  %98 = vmatprep.subr.mxu0 0.0
  %99 = vmatpush2.msra.mxu0 0.0
  %100 = vmatprep.subr.mxu0 0.0
  %101 = vmatpush2.msra.mxu0 0.0
  %102 = vmatprep.subr.mxu0 0.0
  %103 = vmatpush2.msra.mxu0 0.0
  %104 = vmatprep.subr.mxu0 0.0
  %105 = vmatpush2.msra.mxu0 0.0
  %106 = vmatprep.subr.mxu0 0.0
  %107 = vmatpush2.msra.mxu0 0.0
  %108 = vmatprep.subr.mxu0 0.0
  %109 = vmatpush2.msra.mxu0 0.0
  %110 = vmatprep.subr.mxu0 0.0
  %111 = vmatpush2.msra.mxu0 0.0
  %112 = vmatprep.mubr.f32.mxu0 0.0
  %113 = vmatmul.mubr.f32.gmra.mxu0 %v40
  %v114 = vpop.f32.mrf.mxu0
  %v115 = vadd.f32 %v26, %v114
  %v116 = vpop.f32.mrf.mxu0
  %v117 = vadd.f32 %v26, %v116
  %118 = vmatprep.mubr.f32.mxu0 0.0
  %119 = vmatmul.mubr.f32.gmra.mxu0 %v43
  %v120 = vpop.f32.mrf.mxu0
  %v121 = vadd.f32 %v31, %v120
  %v122 = vpop.f32.mrf.mxu0
  %v123 = vadd.f32 %v31, %v122
  %124 = vmatprep.mubr.f32.mxu0 0.0
  %125 = vmatmul.mubr.f32.gmra.mxu0 %v46
  %v126 = vpop.f32.mrf.mxu0
  %v127 = vadd.f32 %v36, %v126
  %v128 = vpop.f32.mrf.mxu0
  %v129 = vadd.f32 %v36, %v128
  %130 = vdwg.mxu0
  %131 = vmatprep.subr.mxu0 0.0
  %132 = vmatpush1.msra.mxu0 0.0
  %133 = vmatprep.subr.mxu0 0.0
  %134 = vmatpush1.msra.mxu0 0.0
  %135 = vmatprep.subr.mxu0 0.0
  %136 = vmatpush1.msra.mxu0 0.0
  %137 = vmatprep.subr.mxu0 0.0
  %138 = vmatpush1.msra.mxu0 0.0
  %139 = vmatprep.subr.mxu0 0.0
  %140 = vmatpush1.msra.mxu0 0.0
  %141 = vmatprep.subr.mxu0 0.0
  %142 = vmatpush1.msra.mxu0 0.0
  %143 = vmatprep.subr.mxu0 0.0
  %144 = vmatpush1.msra.mxu0 0.0
  %145 = vmatprep.subr.mxu0 0.0
  %146 = vmatpush1.msra.mxu0 0.0
  %147 = vmatprep.subr.mxu0 0.0
  %148 = vmatpush1.msra.mxu0 0.0
  %149 = vmatprep.subr.mxu0 0.0
  %150 = vmatpush1.msra.mxu0 0.0
  %151 = vmatprep.subr.mxu0 0.0
  %152 = vmatpush1.msra.mxu0 0.0
  %153 = vmatprep.subr.mxu0 0.0
  %154 = vmatpush1.msra.mxu0 0.0
  %155 = vmatprep.subr.mxu0 0.0
  %156 = vmatpush1.msra.mxu0 0.0
  %157 = vmatprep.subr.mxu0 0.0
  %158 = vmatpush1.msra.mxu0 0.0
  %159 = vmatprep.subr.mxu0 0.0
  %160 = vmatpush1.msra.mxu0 0.0
  %161 = vmatprep.subr.mxu0 0.0
  %162 = vmatpush1.msra.mxu0 %v19
  %163 = vmatprep.subr.mxu0 0.0
  %164 = vmatpush2.msra.mxu0 0.0
  %165 = vmatprep.subr.mxu0 0.0
  %166 = vmatpush2.msra.mxu0 0.0
  %167 = vmatprep.subr.mxu0 0.0
  %168 = vmatpush2.msra.mxu0 0.0
  %169 = vmatprep.subr.mxu0 0.0
  %170 = vmatpush2.msra.mxu0 0.0
  %171 = vmatprep.subr.mxu0 0.0
  %172 = vmatpush2.msra.mxu0 0.0
  %173 = vmatprep.subr.mxu0 0.0
  %174 = vmatpush2.msra.mxu0 0.0
  %175 = vmatprep.subr.mxu0 0.0
  %176 = vmatpush2.msra.mxu0 0.0
  %177 = vmatprep.subr.mxu0 0.0
  %178 = vmatpush2.msra.mxu0 0.0
  %179 = vmatprep.subr.mxu0 0.0
  %180 = vmatpush2.msra.mxu0 0.0
  %181 = vmatprep.subr.mxu0 0.0
  %182 = vmatpush2.msra.mxu0 0.0
  %183 = vmatprep.subr.mxu0 0.0
  %184 = vmatpush2.msra.mxu0 0.0
  %185 = vmatprep.subr.mxu0 0.0
  %186 = vmatpush2.msra.mxu0 0.0
  %187 = vmatprep.subr.mxu0 0.0
  %188 = vmatpush2.msra.mxu0 0.0
  %189 = vmatprep.subr.mxu0 0.0
  %190 = vmatpush2.msra.mxu0 0.0
  %191 = vmatprep.subr.mxu0 0.0
  %192 = vmatpush2.msra.mxu0 0.0
  %193 = vmatprep.subr.mxu0 0.0
  %194 = vmatpush2.msra.mxu0 0.0
  %195 = vmatprep.mubr.f32.mxu0 0.0
  %196 = vmatmul.mubr.f32.gmra.mxu0 %v40
  %v197 = vpop.f32.mrf.mxu0
  %v198 = vadd.f32 %v26, %v197
  %v199 = vpop.f32.mrf.mxu0
  %200 = vmatprep.mubr.f32.mxu0 0.0
  %201 = vmatmul.mubr.f32.gmra.mxu0 %v43
  %v202 = vpop.f32.mrf.mxu0
  %v203 = vadd.f32 %v31, %v202
  %v204 = vpop.f32.mrf.mxu0
  %205 = vmatprep.mubr.f32.mxu0 0.0
  %206 = vmatmul.mubr.f32.gmra.mxu0 %v46
  %v207 = vpop.f32.mrf.mxu0
  %v208 = vadd.f32 %v36, %v207
  %v209 = vpop.f32.mrf.mxu0
  %210 = vdwg.mxu0
  %v211 = vmax.f32 %v115, 475.75
  %v212 = vmax.f32 %v117, 475.75
  %v213 = vmax.f32 %v198, 475.75
  %v214 = vmax.f32 %v121, 475.75
  %v215 = vmax.f32 %v123, 475.75
  %v216 = vmax.f32 %v203, 475.75
  %v217 = vmax.f32 %v127, 475.75
  %v218 = vmax.f32 %v129, 475.75
  %v219 = vmax.f32 %v208, 475.75
  %v220 = vmin.f32 %v211, 489.0
  %v221 = vmin.f32 %v212, 489.0
  %v222 = vmin.f32 %v213, 489.0
  %v223 = vmin.f32 %v214, 489.0
  %v224 = vmin.f32 %v215, 489.0
  %v225 = vmin.f32 %v216, 489.0
  %v226 = vmin.f32 %v217, 489.0
  %v227 = vmin.f32 %v218, 489.0
  %v228 = vmin.f32 %v219, 489.0
  %229 = vst [vmem:[%s3] sm:$0xff] %v220
  %230 = vst [vmem:[%s3 + $0x8] sm:$0xff] %v221
  %231 = vst [vmem:[%s3 + $0x10] sm:$0xff] %v222
  %232 = vst [vmem:[%s3 + $0x18] sm:$0xff] %v223
  %233 = vst [vmem:[%s3 + $0x20] sm:$0xff] %v224
  %234 = vst [vmem:[%s3 + $0x28] sm:$0xff] %v225
  %235 = vst [vmem:[%s3 + $0x30] sm:$0xff] %v226
  %236 = vst [vmem:[%s3 + $0x38] sm:$0xff] %v227
  %237 = vst [vmem:[%s3 + $0x40] sm:$0xff] %v228
  // Predicated region
  $region14: #{model_forward.1} parent=0 // pred_check
    _
  $region15: #{model_forward.1} parent=0 // pred_check_branch
    %239 = sbr.rel (0) target = $region17
  $region16: #{model_forward.1} parent=0 // pred_region
    _
  $region17: #{model_forward.1} parent=0 // pred_fallthru
    _
  // Predicated region
  $region18: #{model_forward.1} parent=0 // pred_check
    _
  $region19: #{model_forward.1} parent=0 // pred_check_branch
    %241 = sbr.rel (0) target = $region21
  $region20: #{model_forward.1} parent=0 // pred_region
    _
  $region21: #{model_forward.1} parent=0 // pred_fallthru
    _

</llo_original>
